<compile_context>
chip_gen: v6e
topology: v6e:2x2x1
jax: 0.10.0
libtpu: 0.0.40
codegen_flags: <defaults>
</compile_context>

<pallas_src>
import jax
import jax.numpy as jnp
from jax.experimental import pallas as pl
from jax.experimental.pallas import tpu as pltpu


_DEFAULT_TILE_HW = 2048   # lanes per grid step: multiple of 128, >=512 for HBM roofline
_N_PARALLEL = 2           # outer "parallel" grid axis -> both v7x TensorCores


def _round_up(a, b):
    return ((a + b - 1) // b) * b


def _make_stats_kernel(n_inner, has_pad):
    """Build the kernel body.  `has_pad` is static: when H*W already tiles
    evenly, all mask work is compiled out."""

    def kernel(x_ref, y_ref, tp_ref, fp_ref, fn_ref, ce_ref,
               tp_acc, sp_acc, cnt_acc, ce_acc):
        t = pl.program_id(1)

        @pl.when(t == 0)
        def _():
            tp_acc[...] = jnp.zeros_like(tp_acc)
            sp_acc[...] = jnp.zeros_like(sp_acc)
            cnt_acc[...] = jnp.zeros_like(cnt_acc)
            ce_acc[...] = jnp.zeros_like(ce_acc)

        x = x_ref[...].astype(jnp.float32)          # (B, C, T) logits (upcast in-kernel)
        y = y_ref[...]                              # (B, 1, T) int32 labels (pad = -1)
        B, C, T = x.shape

        # softmax over the channel axis (== softmax_helper), max-stabilized
        m = jnp.max(x, axis=1, keepdims=True)                       # (B, 1, T)
        e = jnp.exp(x - m)
        s = jnp.sum(e, axis=1, keepdims=True)                       # (B, 1, T)
        prob = e * pl.reciprocal(s, approx=False)                   # e/s via EUP reciprocal

        # one-hot(y) via iota compare (== torch scatter_ one-hot); pad (-1) -> all zeros
        cls = jax.lax.broadcasted_iota(jnp.int32, (B, C, T), 1)
        onehot = (cls == y).astype(jnp.float32)

        tp_acc[...] += jnp.sum(prob * onehot, axis=2)               # (B, C)
        cnt_acc[...] += jnp.sum(onehot, axis=2)                     # (B, C)

        lse = m + jnp.log(s)                                        # (B, 1, T)
        if has_pad:
            valid = (y >= 0).astype(jnp.float32)                    # (B, 1, T)
            sp_acc[...] += jnp.sum(prob * valid, axis=2)
            lse = lse * valid
        else:
            sp_acc[...] += jnp.sum(prob, axis=2)

        # CE: sum_px -log_softmax[target] = sum_px (m + log s) - sum_px x[target]
        xt = jnp.sum(jnp.sum(x * onehot, axis=2), axis=1, keepdims=True)   # (B, 1)
        ce_acc[...] += jnp.sum(lse, axis=2) - xt

        @pl.when(t == n_inner - 1)
        def _():
            tp = tp_acc[...]
            tp_ref[0] = tp
            fp_ref[0] = sp_acc[...] - tp     # sum(prob*(1-onehot)) == sum(prob) - tp
            fn_ref[0] = cnt_acc[...] - tp    # sum((1-prob)*onehot) == count - tp
            ce_ref[0] = ce_acc[...]

    return kernel


def _dice_ce_stats(x_logits, y_labels):
    """x_logits: (B, C, HW) float logits (any float dtype, kept as-is for HBM
    bandwidth), y_labels: (B, 1, HW) int32 -> tp, fp, fn (B, C), ce_sum (B, 1)."""
    B, C, HW = x_logits.shape

    tile = min(_DEFAULT_TILE_HW, _round_up(HW, 128))
    hw_pad = _round_up(HW, tile * _N_PARALLEL)
    has_pad = hw_pad != HW
    if has_pad:
        x_logits = jnp.pad(x_logits, ((0, 0), (0, 0), (0, hw_pad - HW)))
        y_labels = jnp.pad(y_labels, ((0, 0), (0, 0), (0, hw_pad - HW)),
                           constant_values=-1)
    n_tiles = hw_pad // tile
    n_inner = n_tiles // _N_PARALLEL

    kernel = _make_stats_kernel(n_inner, has_pad)

    itemsize_x = jnp.dtype(x_logits.dtype).itemsize
    cost = pl.CostEstimate(
        flops=int(10 * B * C * hw_pad),
        transcendentals=int(B * C * hw_pad + B * hw_pad),   # exp + log
        bytes_accessed=int(B * C * hw_pad * itemsize_x + B * hw_pad * 4
                           + 4 * _N_PARALLEL * B * C * 4),
    )

    grid_spec = pltpu.PrefetchScalarGridSpec(
        num_scalar_prefetch=0,
        grid=(_N_PARALLEL, n_inner),
        in_specs=[
            pl.BlockSpec((B, C, tile), lambda p, t, n=n_inner: (0, 0, p * n + t)),
            pl.BlockSpec((B, 1, tile), lambda p, t, n=n_inner: (0, 0, p * n + t)),
        ],
        out_specs=(
            pl.BlockSpec((1, B, C), lambda p, t: (p, 0, 0)),
            pl.BlockSpec((1, B, C), lambda p, t: (p, 0, 0)),
            pl.BlockSpec((1, B, C), lambda p, t: (p, 0, 0)),
            pl.BlockSpec((1, B, 1), lambda p, t: (p, 0, 0)),
        ),
        scratch_shapes=[
            pltpu.VMEM((B, C), jnp.float32),   # tp accumulator
            pltpu.VMEM((B, C), jnp.float32),   # sum(prob) accumulator
            pltpu.VMEM((B, C), jnp.float32),   # count(onehot) accumulator
            pltpu.VMEM((B, 1), jnp.float32),   # CE accumulator
        ],
    )

    tp_p, fp_p, fn_p, ce_p = pl.pallas_call(
        kernel,
        out_shape=(
            jax.ShapeDtypeStruct((_N_PARALLEL, B, C), jnp.float32),
            jax.ShapeDtypeStruct((_N_PARALLEL, B, C), jnp.float32),
            jax.ShapeDtypeStruct((_N_PARALLEL, B, C), jnp.float32),
            jax.ShapeDtypeStruct((_N_PARALLEL, B, 1), jnp.float32),
        ),
        grid_spec=grid_spec,
        compiler_params=pltpu.CompilerParams(
            dimension_semantics=("parallel", "arbitrary"),
            vmem_limit_bytes=32 * 1024 * 1024,
        ),
        cost_estimate=cost,
    )(x_logits, y_labels)

    # combine per-core partial sums (tiny f32 epilogue)
    return tp_p.sum(0), fp_p.sum(0), fn_p.sum(0), ce_p.sum(0)


class PannLoss:
    """JAX/Pallas re-implementation of pann_loss forward (no learnable params)."""

    def __init__(self, soft_dice_kwargs, ce_kwargs, aggregate='sum', ex=True):
        self.aggregate = aggregate
        # SoftDiceLoss defaults: batch_dice=False, do_bg=True, smooth=1.0
        self.batch_dice = soft_dice_kwargs.get('batch_dice', False)
        self.do_bg = soft_dice_kwargs.get('do_bg', True)
        self.smooth = float(soft_dice_kwargs.get('smooth', 1.0))
        # ce_kwargs: standard CrossEntropyLoss (mean reduction) — no params here.

    # ------------------------------------------------------------------ #
    def __call__(self, net_output, target, default_task, cur_task):
        if tuple(cur_task) != tuple(default_task):
            # pseudo-label construction branch (plain-JAX glue, mirrors torch code)
            target = self._make_pseudo_label(net_output, target, default_task, cur_task)
        dc_loss, ce_loss = self._dc_ce(net_output, target)
        if self.aggregate == 'sum':
            return ce_loss + dc_loss
        elif self.aggregate == 'ce':
            return ce_loss
        elif self.aggregate == 'dc':
            return dc_loss
        else:
            raise NotImplementedError('nah son')

    # ------------------------------------------------------------------ #
    def _dc_ce(self, net_output, target):
        B, C, H, W = net_output.shape
        # keep the input dtype (bf16 logits halve the dominant HBM stream);
        # the kernel upcasts to f32 after the load.
        x = net_output.reshape(B, C, H * W)
        y = target.reshape(B, 1, H * W).astype(jnp.int32)

        tp, fp, fn, ce_sum = _dice_ce_stats(x, y)

        # SoftDiceLoss epilogue
        if self.batch_dice:
            tp = jnp.sum(tp, axis=0)
            fp = jnp.sum(fp, axis=0)
            fn = jnp.sum(fn, axis=0)
        nominator = 2.0 * tp + self.smooth
        denominator = 2.0 * tp + fp + fn + self.smooth
        dc = nominator / denominator
        if not self.do_bg:
            dc = dc[1:] if self.batch_dice else dc[:, 1:]
        dc_loss = -jnp.mean(dc)

        # CrossentropyND: mean over all pixels of -log_softmax at target class
        ce_loss = jnp.sum(ce_sum) / (B * H * W)
        return dc_loss, ce_loss

    # ------------------------------------------------------------------ #
    @staticmethod
    def _make_pseudo_label(net_output, target, default_task, cur_task):
        # TODO(synk): data-dependent relabeling (argmax/scatter/topk over channels)
        # is kept in plain JAX glue; it is cheap setup work, not the hot path.
        default_task = list(default_task)
        cur_task = list(cur_task)
        B, C, H, W = net_output.shape
        depth = len(cur_task) + 1

        t = target.reshape(B, H, W).astype(jnp.int32)
        target_onehot = jax.nn.one_hot(t, depth, axis=1, dtype=jnp.float32)  # (B, depth, H, W)

        new_label = jnp.zeros_like(net_output)
        unlabel_task_index = [0] + [i + 1 for i, task in enumerate(default_task)
                                    if task not in cur_task]

        for i, task in enumerate(default_task):
            if task in cur_task:
                j = cur_task.index(task)
                new_label = new_label.at[:, i + 1].set(target_onehot[:, j + 1])
            else:
                sub = net_output[:, jnp.array(unlabel_task_index)]          # (B, K, H, W)
                max_index = jnp.argmax(sub, axis=1)                         # values in [0, K)
                scat = jax.nn.one_hot(max_index, C, axis=1, dtype=net_output.dtype)
                new_label = jnp.maximum(new_label, scat)                    # scatter_(1, idx, 1)

        clear_mask = jnp.sum(new_label, axis=1, keepdims=True) > 1.0
        new_label = jnp.where(clear_mask, 0.0, new_label)

        for i, task in enumerate(default_task):
            if task in cur_task:
                j = cur_task.index(task)
                new_label = new_label.at[:, i + 1].set(target_onehot[:, j + 1])

        new_label = jnp.argmax(new_label, axis=1, keepdims=True)            # topk(...,1)[1]
        return new_label.astype(jnp.int32)                                  # (B, 1, H, W)


# ---------------------------------------------------------------------- #
# Pure-JAX reference (for correctness check of the default-task branch).
def _reference_pann_loss(net_output, target, sd_kwargs):
    B, C, H, W = net_output.shape
    smooth = float(sd_kwargs.get('smooth', 1.0))
    do_bg = sd_kwargs.get('do_bg', True)
    batch_dice = sd_kwargs.get('batch_dice', False)

    prob = jax.nn.softmax(net_output, axis=1)
    onehot = jax.nn.one_hot(target.reshape(B, H, W), C, axis=1, dtype=jnp.float32)
    tp = jnp.sum(prob * onehot, axis=(2, 3))
    fp = jnp.sum(prob * (1.0 - onehot), axis=(2, 3))
    fn = jnp.sum((1.0 - prob) * onehot, axis=(2, 3))
    if batch_dice:
        tp, fp, fn = tp.sum(0), fp.sum(0), fn.sum(0)
    dc = (2.0 * tp + smooth) / (2.0 * tp + fp + fn + smooth)
    if not do_bg:
        dc = dc[1:] if batch_dice else dc[:, 1:]
    dc_loss = -jnp.mean(dc)
    logp = jax.nn.log_softmax(net_output, axis=1)
    ce_loss = -jnp.sum(logp * onehot) / (B * H * W)
    return ce_loss + dc_loss


if __name__ == "__main__":
    key = jax.random.PRNGKey(0)
    B, C, H, W = 2, 4, 16, 16
    k1, k2 = jax.random.split(key)
    net_output = jax.random.normal(k1, (B, C, H, W), dtype=jnp.float32)   # NCHW logits
    target = jax.random.randint(k2, (B, 1, H, W), 0, C, dtype=jnp.int32)  # label map

    default_task = ('liver', 'kidney', 'spleen')          # C = len(default_task) + 1
    soft_dice_kwargs = {'batch_dice': False, 'do_bg': False, 'smooth': 1e-5}
    ce_kwargs = {}
    loss = PannLoss(soft_dice_kwargs, ce_kwargs, aggregate='sum')

    # Branch 1: cur_task == default_task
    out1 = jax.block_until_ready(loss(net_output, target, default_task, default_task))
    ref1 = jax.block_until_ready(_reference_pann_loss(net_output, target, soft_dice_kwargs))
    assert jnp.allclose(out1, ref1, rtol=1e-4, atol=1e-4), (out1, ref1)

    # Branch 2: cur_task != default_task (pseudo-label path); labels < len(cur_task)+1
    cur_task = ('liver', 'spleen')
    target2 = jnp.clip(target, 0, len(cur_task))
    out2 = jax.block_until_ready(loss(net_output, target2, default_task, cur_task))
    assert bool(jnp.isfinite(out2))

    print("KERNEL_OK")
</pallas_src>

<mosaic_0001>
module attributes {stable_mosaic.version = 11 : i64} {
  func.func @kernel(%arg0: i32, %arg1: i32, %arg2: memref<2x4x256xf32, #tpu.memory_space<vmem>>, %arg3: memref<2x1x256xi32, #tpu.memory_space<vmem>>, %arg4: memref<1x2x4xf32, #tpu.memory_space<vmem>>, %arg5: memref<1x2x4xf32, #tpu.memory_space<vmem>>, %arg6: memref<1x2x4xf32, #tpu.memory_space<vmem>>, %arg7: memref<1x2x1xf32, #tpu.memory_space<vmem>>, %arg8: memref<2x4xf32, #tpu.memory_space<vmem>>, %arg9: memref<2x4xf32, #tpu.memory_space<vmem>>, %arg10: memref<2x4xf32, #tpu.memory_space<vmem>>, %arg11: memref<2x1xf32, #tpu.memory_space<vmem>>) attributes {dimension_semantics = [#tpu.dimension_semantics<parallel>, #tpu.dimension_semantics<arbitrary>], iteration_bounds = array<i64: 2, 1>, scalar_prefetch = 0 : i64, scratch_operands = 4 : i64, tpu.core_type = #tpu.core_type<tc>, window_params = [{transform_indices = @transform_0, window_bounds = array<i64: 2, 4, 256>}, {transform_indices = @transform_1, window_bounds = array<i64: 2, 1, 256>}, {transform_indices = @transform_2, window_bounds = array<i64: 1, 2, 4>}, {transform_indices = @transform_3, window_bounds = array<i64: 1, 2, 4>}, {transform_indices = @transform_4, window_bounds = array<i64: 1, 2, 4>}, {transform_indices = @transform_5, window_bounds = array<i64: 1, 2, 1>}]} {
    %c0_i32 = arith.constant 0 : i32
    %0 = arith.cmpi eq, %arg1, %c0_i32 : i32
    %1 = arith.extui %0 : i1 to i32
    %c0_i32_0 = arith.constant 0 : i32
    %2 = arith.cmpi ne, %1, %c0_i32_0 : i32
    scf.if %2 {
      %cst_32 = arith.constant 0.000000e+00 : f32
      %54 = vector.broadcast %cst_32 : f32 to vector<2x4xf32>
      %c0_33 = arith.constant 0 : index
      %c0_34 = arith.constant 0 : index
      %55 = vector.load %arg8[%c0_33, %c0_34] : memref<2x4xf32, #tpu.memory_space<vmem>>, vector<2x4xf32>
      tpu.vector_store %arg8[%c0_33, %c0_34], %54 {strides = array<i32>} : memref<2x4xf32, #tpu.memory_space<vmem>>, vector<2x4xf32>,
      %cst_35 = arith.constant 0.000000e+00 : f32
      %56 = vector.broadcast %cst_35 : f32 to vector<2x4xf32>
      %c0_36 = arith.constant 0 : index
      %c0_37 = arith.constant 0 : index
      %57 = vector.load %arg9[%c0_36, %c0_37] : memref<2x4xf32, #tpu.memory_space<vmem>>, vector<2x4xf32>
      tpu.vector_store %arg9[%c0_36, %c0_37], %56 {strides = array<i32>} : memref<2x4xf32, #tpu.memory_space<vmem>>, vector<2x4xf32>,
      %cst_38 = arith.constant 0.000000e+00 : f32
      %58 = vector.broadcast %cst_38 : f32 to vector<2x4xf32>
      %c0_39 = arith.constant 0 : index
      %c0_40 = arith.constant 0 : index
      %59 = vector.load %arg10[%c0_39, %c0_40] : memref<2x4xf32, #tpu.memory_space<vmem>>, vector<2x4xf32>
      tpu.vector_store %arg10[%c0_39, %c0_40], %58 {strides = array<i32>} : memref<2x4xf32, #tpu.memory_space<vmem>>, vector<2x4xf32>,
      %cst_41 = arith.constant 0.000000e+00 : f32
      %60 = vector.broadcast %cst_41 : f32 to vector<2x1xf32>
      %c0_42 = arith.constant 0 : index
      %c0_43 = arith.constant 0 : index
      %61 = vector.load %arg11[%c0_42, %c0_43] : memref<2x1xf32, #tpu.memory_space<vmem>>, vector<2x1xf32>
      tpu.vector_store %arg11[%c0_42, %c0_43], %60 {strides = array<i32>} : memref<2x1xf32, #tpu.memory_space<vmem>>, vector<2x1xf32>,
    } else {
    }
    %c0 = arith.constant 0 : index
    %c0_1 = arith.constant 0 : index
    %c0_2 = arith.constant 0 : index
    %3 = vector.load %arg2[%c0, %c0_1, %c0_2] : memref<2x4x256xf32, #tpu.memory_space<vmem>>, vector<2x4x256xf32>
    %c0_3 = arith.constant 0 : index
    %c0_4 = arith.constant 0 : index
    %c0_5 = arith.constant 0 : index
    %4 = vector.load %arg3[%c0_3, %c0_4, %c0_5] : memref<2x1x256xi32, #tpu.memory_space<vmem>>, vector<2x1x256xi32>
    %cst = arith.constant dense<0xFF800000> : vector<2x256xf32>
    %5 = vector.multi_reduction <maximumf>, %3, %cst [1] : vector<2x4x256xf32> to vector<2x256xf32>
    %6 = vector.shape_cast %5 : vector<2x256xf32> to vector<2x1x256xf32>
    %7 = vector.broadcast %6 : vector<2x1x256xf32> to vector<2x4x256xf32>
    %8 = arith.subf %3, %7 : vector<2x4x256xf32>
    %9 = math.exp %8 : vector<2x4x256xf32>
    %cst_6 = arith.constant dense<0.000000e+00> : vector<2x256xf32>
    %10 = vector.multi_reduction <add>, %9, %cst_6 [1] : vector<2x4x256xf32> to vector<2x256xf32>
    %11 = vector.shape_cast %10 : vector<2x256xf32> to vector<2x1x256xf32>
    %12 = tpu.reciprocal %11 : vector<2x1x256xf32> -> vector<2x1x256xf32>
    %13 = vector.broadcast %12 : vector<2x1x256xf32> to vector<2x4x256xf32>
    %14 = arith.mulf %9, %13 : vector<2x4x256xf32>
    %15 = tpu.iota {dimensions = array<i32: 1>} : vector<2x4x256xi32>
    %16 = vector.broadcast %4 : vector<2x1x256xi32> to vector<2x4x256xi32>
    %17 = arith.cmpi eq, %15, %16 : vector<2x4x256xi32>
    %18 = arith.extui %17 : vector<2x4x256xi1> to vector<2x4x256xi32>
    %19 = arith.sitofp %18 : vector<2x4x256xi32> to vector<2x4x256xf32>
    %c0_7 = arith.constant 0 : index
    %c0_8 = arith.constant 0 : index
    %20 = vector.load %arg8[%c0_7, %c0_8] : memref<2x4xf32, #tpu.memory_space<vmem>>, vector<2x4xf32>
    %21 = arith.mulf %14, %19 : vector<2x4x256xf32>
    %cst_9 = arith.constant dense<0.000000e+00> : vector<2x4xf32>
    %22 = vector.multi_reduction <add>, %21, %cst_9 [2] : vector<2x4x256xf32> to vector<2x4xf32>
    %23 = arith.addf %20, %22 : vector<2x4xf32>
    %c0_10 = arith.constant 0 : index
    %c0_11 = arith.constant 0 : index
    %24 = vector.load %arg8[%c0_10, %c0_11] : memref<2x4xf32, #tpu.memory_space<vmem>>, vector<2x4xf32>
    tpu.vector_store %arg8[%c0_10, %c0_11], %23 {strides = array<i32>} : memref<2x4xf32, #tpu.memory_space<vmem>>, vector<2x4xf32>,
    %c0_12 = arith.constant 0 : index
    %c0_13 = arith.constant 0 : index
    %25 = vector.load %arg10[%c0_12, %c0_13] : memref<2x4xf32, #tpu.memory_space<vmem>>, vector<2x4xf32>
    %cst_14 = arith.constant dense<0.000000e+00> : vector<2x4xf32>
    %26 = vector.multi_reduction <add>, %19, %cst_14 [2] : vector<2x4x256xf32> to vector<2x4xf32>
    %27 = arith.addf %25, %26 : vector<2x4xf32>
    %c0_15 = arith.constant 0 : index
    %c0_16 = arith.constant 0 : index
    %28 = vector.load %arg10[%c0_15, %c0_16] : memref<2x4xf32, #tpu.memory_space<vmem>>, vector<2x4xf32>
    tpu.vector_store %arg10[%c0_15, %c0_16], %27 {strides = array<i32>} : memref<2x4xf32, #tpu.memory_space<vmem>>, vector<2x4xf32>,
    %29 = math.log %11 : vector<2x1x256xf32>
    %30 = arith.addf %6, %29 : vector<2x1x256xf32>
    %c0_i32_17 = arith.constant 0 : i32
    %31 = vector.broadcast %c0_i32_17 : i32 to vector<2x1x256xi32>
    %32 = arith.cmpi sge, %4, %31 : vector<2x1x256xi32>
    %33 = arith.extui %32 : vector<2x1x256xi1> to vector<2x1x256xi32>
    %34 = arith.sitofp %33 : vector<2x1x256xi32> to vector<2x1x256xf32>
    %c0_18 = arith.constant 0 : index
    %c0_19 = arith.constant 0 : index
    %35 = vector.load %arg9[%c0_18, %c0_19] : memref<2x4xf32, #tpu.memory_space<vmem>>, vector<2x4xf32>
    %36 = vector.broadcast %34 : vector<2x1x256xf32> to vector<2x4x256xf32>
    %37 = arith.mulf %14, %36 : vector<2x4x256xf32>
    %cst_20 = arith.constant dense<0.000000e+00> : vector<2x4xf32>
    %38 = vector.multi_reduction <add>, %37, %cst_20 [2] : vector<2x4x256xf32> to vector<2x4xf32>
    %39 = arith.addf %35, %38 : vector<2x4xf32>
    %c0_21 = arith.constant 0 : index
    %c0_22 = arith.constant 0 : index
    %40 = vector.load %arg9[%c0_21, %c0_22] : memref<2x4xf32, #tpu.memory_space<vmem>>, vector<2x4xf32>
    tpu.vector_store %arg9[%c0_21, %c0_22], %39 {strides = array<i32>} : memref<2x4xf32, #tpu.memory_space<vmem>>, vector<2x4xf32>,
    %41 = arith.mulf %30, %34 : vector<2x1x256xf32>
    %42 = arith.mulf %3, %19 : vector<2x4x256xf32>
    %cst_23 = arith.constant dense<0.000000e+00> : vector<2x4xf32>
    %43 = vector.multi_reduction <add>, %42, %cst_23 [2] : vector<2x4x256xf32> to vector<2x4xf32>
    %cst_24 = arith.constant dense<0.000000e+00> : vector<2xf32>
    %44 = vector.multi_reduction <add>, %43, %cst_24 [1] : vector<2x4xf32> to vector<2xf32>
    %45 = vector.shape_cast %44 : vector<2xf32> to vector<2x1xf32>
    %c0_25 = arith.constant 0 : index
    %c0_26 = arith.constant 0 : index
    %46 = vector.load %arg11[%c0_25, %c0_26] : memref<2x1xf32, #tpu.memory_space<vmem>>, vector<2x1xf32>
    %cst_27 = arith.constant dense<0.000000e+00> : vector<2x1xf32>
    %47 = vector.multi_reduction <add>, %41, %cst_27 [2] : vector<2x1x256xf32> to vector<2x1xf32>
    %48 = arith.subf %47, %45 : vector<2x1xf32>
    %49 = arith.addf %46, %48 : vector<2x1xf32>
    %c0_28 = arith.constant 0 : index
    %c0_29 = arith.constant 0 : index
    %50 = vector.load %arg11[%c0_28, %c0_29] : memref<2x1xf32, #tpu.memory_space<vmem>>, vector<2x1xf32>
    tpu.vector_store %arg11[%c0_28, %c0_29], %49 {strides = array<i32>} : memref<2x1xf32, #tpu.memory_space<vmem>>, vector<2x1xf32>,
    %c0_i32_30 = arith.constant 0 : i32
    %51 = arith.cmpi eq, %arg1, %c0_i32_30 : i32
    %52 = arith.extui %51 : i1 to i32
    %c0_i32_31 = arith.constant 0 : i32
    %53 = arith.cmpi ne, %52, %c0_i32_31 : i32
    scf.if %53 {
      %c0_32 = arith.constant 0 : index
      %c0_33 = arith.constant 0 : index
      %54 = vector.load %arg8[%c0_32, %c0_33] : memref<2x4xf32, #tpu.memory_space<vmem>>, vector<2x4xf32>
      %c0_34 = arith.constant 0 : index
      %c0_35 = arith.constant 0 : index
      %c0_36 = arith.constant 0 : index
      %55 = vector.load %arg4[%c0_34, %c0_35, %c0_36] : memref<1x2x4xf32, #tpu.memory_space<vmem>>, vector<1x2x4xf32>
      %56 = vector.shape_cast %55 : vector<1x2x4xf32> to vector<2x4xf32>
      %57 = vector.shape_cast %54 : vector<2x4xf32> to vector<1x2x4xf32>
      tpu.vector_store %arg4[%c0_34, %c0_35, %c0_36], %57 {strides = array<i32>} : memref<1x2x4xf32, #tpu.memory_space<vmem>>, vector<1x2x4xf32>,
      %c0_37 = arith.constant 0 : index
      %c0_38 = arith.constant 0 : index
      %58 = vector.load %arg9[%c0_37, %c0_38] : memref<2x4xf32, #tpu.memory_space<vmem>>, vector<2x4xf32>
      %59 = arith.subf %58, %54 : vector<2x4xf32>
      %c0_39 = arith.constant 0 : index
      %c0_40 = arith.constant 0 : index
      %c0_41 = arith.constant 0 : index
      %60 = vector.load %arg5[%c0_39, %c0_40, %c0_41] : memref<1x2x4xf32, #tpu.memory_space<vmem>>, vector<1x2x4xf32>
      %61 = vector.shape_cast %60 : vector<1x2x4xf32> to vector<2x4xf32>
      %62 = vector.shape_cast %59 : vector<2x4xf32> to vector<1x2x4xf32>
      tpu.vector_store %arg5[%c0_39, %c0_40, %c0_41], %62 {strides = array<i32>} : memref<1x2x4xf32, #tpu.memory_space<vmem>>, vector<1x2x4xf32>,
      %c0_42 = arith.constant 0 : index
      %c0_43 = arith.constant 0 : index
      %63 = vector.load %arg10[%c0_42, %c0_43] : memref<2x4xf32, #tpu.memory_space<vmem>>, vector<2x4xf32>
      %64 = arith.subf %63, %54 : vector<2x4xf32>
      %c0_44 = arith.constant 0 : index
      %c0_45 = arith.constant 0 : index
      %c0_46 = arith.constant 0 : index
      %65 = vector.load %arg6[%c0_44, %c0_45, %c0_46] : memref<1x2x4xf32, #tpu.memory_space<vmem>>, vector<1x2x4xf32>
      %66 = vector.shape_cast %65 : vector<1x2x4xf32> to vector<2x4xf32>
      %67 = vector.shape_cast %64 : vector<2x4xf32> to vector<1x2x4xf32>
      tpu.vector_store %arg6[%c0_44, %c0_45, %c0_46], %67 {strides = array<i32>} : memref<1x2x4xf32, #tpu.memory_space<vmem>>, vector<1x2x4xf32>,
      %c0_47 = arith.constant 0 : index
      %c0_48 = arith.constant 0 : index
      %68 = vector.load %arg11[%c0_47, %c0_48] : memref<2x1xf32, #tpu.memory_space<vmem>>, vector<2x1xf32>
      %c0_49 = arith.constant 0 : index
      %c0_50 = arith.constant 0 : index
      %c0_51 = arith.constant 0 : index
      %69 = vector.load %arg7[%c0_49, %c0_50, %c0_51] : memref<1x2x1xf32, #tpu.memory_space<vmem>>, vector<1x2x1xf32>
      %70 = vector.shape_cast %69 : vector<1x2x1xf32> to vector<2x1xf32>
      %71 = vector.shape_cast %68 : vector<2x1xf32> to vector<1x2x1xf32>
      tpu.vector_store %arg7[%c0_49, %c0_50, %c0_51], %71 {strides = array<i32>} : memref<1x2x1xf32, #tpu.memory_space<vmem>>, vector<1x2x1xf32>,
    } else {
    }
    return
  }
  func.func @transform_0(%arg0: i32, %arg1: i32) -> (i32, i32, i32) {
    %c1_i32 = arith.constant 1 : i32
    %0 = arith.muli %arg0, %c1_i32 : i32
    %1 = arith.addi %0, %arg1 : i32
    %c0_i32 = arith.constant 0 : i32
    %c0_i32_0 = arith.constant 0 : i32
    %c0_i32_1 = arith.constant 0 : i32
    return %c0_i32, %c0_i32_0, %1 : i32, i32, i32
  }
  func.func @transform_1(%arg0: i32, %arg1: i32) -> (i32, i32, i32) {
    %c1_i32 = arith.constant 1 : i32
    %0 = arith.muli %arg0, %c1_i32 : i32
    %1 = arith.addi %0, %arg1 : i32
    %c0_i32 = arith.constant 0 : i32
    %c0_i32_0 = arith.constant 0 : i32
    %c0_i32_1 = arith.constant 0 : i32
    return %c0_i32, %c0_i32_0, %1 : i32, i32, i32
  }
  func.func @transform_2(%arg0: i32, %arg1: i32) -> (i32, i32, i32) {
    %c0_i32 = arith.constant 0 : i32
    %c0_i32_0 = arith.constant 0 : i32
    %c0_i32_1 = arith.constant 0 : i32
    return %arg0, %c0_i32, %c0_i32_0 : i32, i32, i32
  }
  func.func @transform_3(%arg0: i32, %arg1: i32) -> (i32, i32, i32) {
    %c0_i32 = arith.constant 0 : i32
    %c0_i32_0 = arith.constant 0 : i32
    %c0_i32_1 = arith.constant 0 : i32
    return %arg0, %c0_i32, %c0_i32_0 : i32, i32, i32
  }
  func.func @transform_4(%arg0: i32, %arg1: i32) -> (i32, i32, i32) {
    %c0_i32 = arith.constant 0 : i32
    %c0_i32_0 = arith.constant 0 : i32
    %c0_i32_1 = arith.constant 0 : i32
    return %arg0, %c0_i32, %c0_i32_0 : i32, i32, i32
  }
  func.func @transform_5(%arg0: i32, %arg1: i32) -> (i32, i32, i32) {
    %c0_i32 = arith.constant 0 : i32
    %c0_i32_0 = arith.constant 0 : i32
    %c0_i32_1 = arith.constant 0 : i32
    return %arg0, %c0_i32, %c0_i32_0 : i32, i32, i32
  }
}

</mosaic_0001>

<llo_original>
// kernel: tpu_custom_call.1
$region0: #{tpu_custom_call.1}
  #allocation0 [shape = 'u32[]', space=smem, size = 0x4, offset = 0x4, fixed_abs, tag = 'smem constant byte address 0x4 - core index']
  #allocation1 [shape = 'u32[144,128]{1,0:T(1,128)}', space=vmem, size = 0x12000, scoped, tag = 'internal scratch']
  #allocation2 [shape = 'f32[2,4]{1,0:T(2,128)}', space=vmem, size = 0x400, scoped, tag = 'scratch operand']
  #allocation3 [shape = 'f32[2,4]{1,0:T(2,128)}', space=vmem, size = 0x400, scoped, tag = 'scratch operand']
  #allocation4 [shape = 'f32[2,4]{1,0:T(2,128)}', space=vmem, size = 0x400, scoped, tag = 'scratch operand']
  #allocation5 [shape = 'f32[2,1]{1,0:T(2,128)}', space=vmem, size = 0x400, scoped, tag = 'scratch operand']
  %s0 = inlined_call_operand.hbm [shape: f32[2,4,512], index: 0, kind: input, shape index: {}]
  %s1 = inlined_call_operand.hbm [shape: s32[2,1,512], index: 1, kind: input, shape index: {}]
  %s2 = inlined_call_operand.hbm [shape: f32[2,2,4], index: 2, kind: output, shape index: {0}]
  %s3 = inlined_call_operand.hbm [shape: f32[2,2,4], index: 3, kind: output, shape index: {1}]
  %s4 = inlined_call_operand.hbm [shape: f32[2,2,4], index: 4, kind: output, shape index: {2}]
  %s5 = inlined_call_operand.vmem [shape: f32[2,2,1], index: 5, kind: output, shape index: {3}]
  %6 = xla_tuple %s2, %s3, %s4, %s5
  %s7 = sld [smem:[#allocation0]]
  $region81: #{tpu_custom_call.1} parent=0
    _
  %s9 = ssub.s32 1, %s7
  %s10 = scalar_select 0, %s9, %s7
  $region1: #{tpu_custom_call.1} parent=0
    #allocation6 [shape = 'u8[16384]{0}', space=vmem, size = 0x4000, scoped, tag = 'input window, operand 0']
    #allocation7 [shape = 's32[2]{0}', space=sflag, size = 0x8, scoped, tag = 'scoped memory for tpu_custom_call.1']
    #allocation8 [shape = 's32[2]{0}', space=sflag, size = 0x8, scoped, tag = 'scoped memory for tpu_custom_call.1']
    #allocation9 [shape = 'u8[4096]{0}', space=vmem, size = 0x1000, scoped, tag = 'input window, operand 1']
    #allocation10 [shape = 's32[2]{0}', space=sflag, size = 0x8, scoped, tag = 'scoped memory for tpu_custom_call.1']
    #allocation11 [shape = 'u8[2048]{0}', space=vmem, size = 0x800, scoped, tag = 'output window, operand 0']
    #allocation12 [shape = 'u8[2048]{0}', space=vmem, size = 0x800, scoped, tag = 'output window, operand 1']
    #allocation13 [shape = 's32[2]{0}', space=sflag, size = 0x8, scoped, tag = 'scoped memory for tpu_custom_call.1']
    #allocation14 [shape = 'u8[2048]{0}', space=vmem, size = 0x800, scoped, tag = 'output window, operand 2']
    %11 = vsyncpa [#allocation7], 0
    %s12 = scalar_lea.sflag [#allocation7], 1
    %13 = vsyncpa %s12, 0
    %14 = vsyncpa [#allocation10], 0
    %s15 = scalar_lea.sflag [#allocation10], 1
    %16 = vsyncpa %s15, 0
    %17 = vsyncpa [#allocation8], 0
    %s18 = scalar_lea.sflag [#allocation8], 1
    %19 = vsyncpa %s18, 0
    %20 = vsyncpa [#allocation13], 0
    %s21 = scalar_lea.sflag [#allocation13], 1
    %22 = vsyncpa %s21, 0
    loop: start=0, step=1, limit=4
    $region2: #{tpu_custom_call.1} parent=1 // loop_pre_header
      _
    $region3: #{tpu_custom_call.1} parent=1 // loop_header
      %s24 = sphi 0, %s28
      %p25 = scmp.ge.s32.totalorder %s24, 4
      %s31 = sphi 0, %s43
      %s32 = sphi 0, %s39
      %s33 = sphi 0, %s31
      %s34 = sphi 0, %s32
      %s35 = sphi 0, %s33
      %s36 = sphi 0, %s34
      %s48 = sphi 0, %s50
      %s51 = sphi 0, %s48
      %s52 = sphi 0, %s51
      %s68 = sphi 0, %s52
      %s76 = sphi 0, %s78
      %s79 = sphi 0, %s76
      %s80 = sphi 0, %s79
      %s96 = sphi 0, %s80
      %s102 = sphi 0, %s104
      %s105 = sphi 0, %s102
      %s106 = sphi 0, %s105
      %s122 = sphi 0, %s106
      %s128 = sphi 0, %s130
      %s131 = sphi 0, %s128
      %s132 = sphi 0, %s131
      %s148 = sphi 0, %s132
      %s154 = sphi 0, %s156
      %s157 = sphi 0, %s154
      %s158 = sphi 0, %s157
      %s174 = sphi 0, %s158
      %s180 = sphi 0, %s182
      %s183 = sphi 0, %s180
      %s184 = sphi 0, %s183
      %s200 = sphi 0, %s184
    $region4: #{tpu_custom_call.1} parent=1 // loop_header_branch
      %27 = sbr.rel (%p25) target = $region8
    $region5: #{tpu_custom_call.1} parent=1 // loop_body
      %s29 = ssub.s32 %s24, 1
      %s30 = ssub.s32 %s24, 2
      %s37 = sadd.s32 1, %s32
      %p38 = scmp.ge.s32.totalorder %s37, 1
      %s39 = scalar_select %p38, 0, %s37
      %s40 = sadd.s32 1, %s31
      %s41 = scalar_select %p38, %s40, %s31
      %p42 = scmp.ge.s32.totalorder %s41, 2
      %s43 = scalar_select %p42, 0, %s41
      %s44 = sadd.s32 %s31, %s32
      %s45 = sadd.s32 %s43, %s39
      %s46 = ssub.s32 %s44, %s45
      %p47 = scmp.eq.s32.totalorder %s46, 0
      %s49 = sadd.s32 %s48, 1
      %s50 = scalar_select %p47, %s48, %s49
      %p53 = pneg %p47
      %p54 = scmp.eq.s32.totalorder %s24, 1
      %p55 = por %p53, %p54
      %p56 = scmp.ne.s32.totalorder %s48, %s51
      %p57 = scmp.eq.s32.totalorder %s24, 0
      %p58 = por %p56, %p57
      %p59 = scmp.ne.s32.totalorder %s48, %s51
      %p60 = scmp.eq.s32.totalorder %s29, 1
      %p61 = por %p59, %p60
      %p62 = scmp.ne.s32.totalorder %s51, %s52
      %p63 = scmp.eq.s32.totalorder %s29, 0
      %p64 = por %p62, %p63
      %p65 = scmp.ne.s32.totalorder %s51, %s52
      %p66 = scmp.eq.s32.totalorder %s30, 1
      %p67 = por %p65, %p66
      %p69 = scmp.ne.s32.totalorder %s52, %s68
      %p70 = scmp.eq.s32.totalorder %s30, 0
      %p71 = por %p69, %p70
      %s72 = sadd.s32 %s31, %s32
      %s73 = sadd.s32 %s43, %s39
      %s74 = ssub.s32 %s72, %s73
      %p75 = scmp.eq.s32.totalorder %s74, 0
      %s77 = sadd.s32 %s76, 1
      %s78 = scalar_select %p75, %s76, %s77
      %p81 = pneg %p75
      %p82 = scmp.eq.s32.totalorder %s24, 1
      %p83 = por %p81, %p82
      %p84 = scmp.ne.s32.totalorder %s76, %s79
      %p85 = scmp.eq.s32.totalorder %s24, 0
      %p86 = por %p84, %p85
      %p87 = scmp.ne.s32.totalorder %s76, %s79
      %p88 = scmp.eq.s32.totalorder %s29, 1
      %p89 = por %p87, %p88
      %p90 = scmp.ne.s32.totalorder %s79, %s80
      %p91 = scmp.eq.s32.totalorder %s29, 0
      %p92 = por %p90, %p91
      %p93 = scmp.ne.s32.totalorder %s79, %s80
      %p94 = scmp.eq.s32.totalorder %s30, 1
      %p95 = por %p93, %p94
      %p97 = scmp.ne.s32.totalorder %s80, %s96
      %p98 = scmp.eq.s32.totalorder %s30, 0
      %p99 = por %p97, %p98
      %s100 = ssub.s32 %s31, %s43
      %p101 = scmp.eq.s32.totalorder %s100, 0
      %s103 = sadd.s32 %s102, 1
      %s104 = scalar_select %p101, %s102, %s103
      %p107 = pneg %p101
      %p108 = scmp.eq.s32.totalorder %s24, 1
      %p109 = por %p107, %p108
      %p110 = scmp.ne.s32.totalorder %s102, %s105
      %p111 = scmp.eq.s32.totalorder %s24, 0
      %p112 = por %p110, %p111
      %p113 = scmp.ne.s32.totalorder %s102, %s105
      %p114 = scmp.eq.s32.totalorder %s29, 1
      %p115 = por %p113, %p114
      %p116 = scmp.ne.s32.totalorder %s105, %s106
      %p117 = scmp.eq.s32.totalorder %s29, 0
      %p118 = por %p116, %p117
      %p119 = scmp.ne.s32.totalorder %s105, %s106
      %p120 = scmp.eq.s32.totalorder %s30, 1
      %p121 = por %p119, %p120
      %p123 = scmp.ne.s32.totalorder %s106, %s122
      %p124 = scmp.eq.s32.totalorder %s30, 0
      %p125 = por %p123, %p124
      %s126 = ssub.s32 %s31, %s43
      %p127 = scmp.eq.s32.totalorder %s126, 0
      %s129 = sadd.s32 %s128, 1
      %s130 = scalar_select %p127, %s128, %s129
      %p133 = pneg %p127
      %p134 = scmp.eq.s32.totalorder %s24, 1
      %p135 = por %p133, %p134
      %p136 = scmp.ne.s32.totalorder %s128, %s131
      %p137 = scmp.eq.s32.totalorder %s24, 0
      %p138 = por %p136, %p137
      %p139 = scmp.ne.s32.totalorder %s128, %s131
      %p140 = scmp.eq.s32.totalorder %s29, 1
      %p141 = por %p139, %p140
      %p142 = scmp.ne.s32.totalorder %s131, %s132
      %p143 = scmp.eq.s32.totalorder %s29, 0
      %p144 = por %p142, %p143
      %p145 = scmp.ne.s32.totalorder %s131, %s132
      %p146 = scmp.eq.s32.totalorder %s30, 1
      %p147 = por %p145, %p146
      %p149 = scmp.ne.s32.totalorder %s132, %s148
      %p150 = scmp.eq.s32.totalorder %s30, 0
      %p151 = por %p149, %p150
      %s152 = ssub.s32 %s31, %s43
      %p153 = scmp.eq.s32.totalorder %s152, 0
      %s155 = sadd.s32 %s154, 1
      %s156 = scalar_select %p153, %s154, %s155
      %p159 = pneg %p153
      %p160 = scmp.eq.s32.totalorder %s24, 1
      %p161 = por %p159, %p160
      %p162 = scmp.ne.s32.totalorder %s154, %s157
      %p163 = scmp.eq.s32.totalorder %s24, 0
      %p164 = por %p162, %p163
      %p165 = scmp.ne.s32.totalorder %s154, %s157
      %p166 = scmp.eq.s32.totalorder %s29, 1
      %p167 = por %p165, %p166
      %p168 = scmp.ne.s32.totalorder %s157, %s158
      %p169 = scmp.eq.s32.totalorder %s29, 0
      %p170 = por %p168, %p169
      %p171 = scmp.ne.s32.totalorder %s157, %s158
      %p172 = scmp.eq.s32.totalorder %s30, 1
      %p173 = por %p171, %p172
      %p175 = scmp.ne.s32.totalorder %s158, %s174
      %p176 = scmp.eq.s32.totalorder %s30, 0
      %p177 = por %p175, %p176
      %s178 = ssub.s32 %s31, %s43
      %p179 = scmp.eq.s32.totalorder %s178, 0
      %s181 = sadd.s32 %s180, 1
      %s182 = scalar_select %p179, %s180, %s181
      %p185 = pneg %p179
      %p186 = scmp.eq.s32.totalorder %s24, 1
      %p187 = por %p185, %p186
      %p188 = scmp.ne.s32.totalorder %s180, %s183
      %p189 = scmp.eq.s32.totalorder %s24, 0
      %p190 = por %p188, %p189
      %p191 = scmp.ne.s32.totalorder %s180, %s183
      %p192 = scmp.eq.s32.totalorder %s29, 1
      %p193 = por %p191, %p192
      %p194 = scmp.ne.s32.totalorder %s183, %s184
      %p195 = scmp.eq.s32.totalorder %s29, 0
      %p196 = por %p194, %p195
      %p197 = scmp.ne.s32.totalorder %s183, %s184
      %p198 = scmp.eq.s32.totalorder %s30, 1
      %p199 = por %p197, %p198
      %p201 = scmp.ne.s32.totalorder %s184, %s200
      %p202 = scmp.eq.s32.totalorder %s30, 0
      %p203 = por %p201, %p202
      %p204 = scmp.le.s32.totalorder 1, %s24
      %p205 = scmp.lt.s32.totalorder %s24, 3
      %p206 = pnand %p204, %p205
      %p207 = pneg %p206
      // Predicated region
      $region9: #{tpu_custom_call.1} parent=5 // pred_check
        _
      $region10: #{tpu_custom_call.1} parent=5 // pred_check_branch
        %209 = sbr.rel (%p206) target = $region12
      $region11: #{tpu_custom_call.1} parent=5 // pred_region
        %s210 = ssub.s32 %s24, 1
      $region12: #{tpu_custom_call.1} parent=5 // pred_fallthru
        _
      %p211 = scmp.lt.s32.totalorder %s24, 2
      // Predicated region
      $region13: #{tpu_custom_call.1} parent=5 // pred_check
        %p212 = pneg %p211
      $region14: #{tpu_custom_call.1} parent=5 // pred_check_branch
        %214 = sbr.rel (%p212) target = $region16
      $region15: #{tpu_custom_call.1} parent=5 // pred_region
        // Predicated region
        $region17: #{tpu_custom_call.1} parent=15 // pred_check
          %p215 = pneg %p58
        $region18: #{tpu_custom_call.1} parent=15 // pred_check_branch
          %217 = sbr.rel (%p215) target = $region20
        $region19: #{tpu_custom_call.1} parent=15 // pred_region
          %s218 = sand.u32 %s48, 1
          %s219 = scalar_lea.sflag [#allocation7], %s218
          %s220 = sand.u32 %s48, 1
          %s221 = smul.addr %s220, 16
          %s222 = scalar_lea.vmem [#allocation6], %s221
          %s223 = sadd.s32 %s31, %s32
          %s224 = smul.u32 2, %s223
          %s226 = ssub.s32 256, 256
          %227 = vsyncadd %s219, %s226
          %s228 = smul.addr %s224, 64
          %s229 = scalar_lea.hbm %s0, %s228
          %s230 = sshll.u32 %s222, 4
          %s231 = int_to_ptr.vmem [resolvable:$true] %s230
          %236 = dma.hbm_to_vmem [thread:$0]  %s229, 256, %s231, %s219, 256, 128, 8
        $region20: #{tpu_custom_call.1} parent=15 // pred_fallthru
          _
        // Predicated region
        $region21: #{tpu_custom_call.1} parent=15 // pred_check
          %p237 = pneg %p86
        $region22: #{tpu_custom_call.1} parent=15 // pred_check_branch
          %239 = sbr.rel (%p237) target = $region24
        $region23: #{tpu_custom_call.1} parent=15 // pred_region
          %s240 = sand.u32 %s76, 1
          %s241 = scalar_lea.sflag [#allocation10], %s240
          %s242 = sand.u32 %s76, 1
          %s243 = smul.addr %s242, 4
          %s244 = scalar_lea.vmem [#allocation9], %s243
          %s245 = sadd.s32 %s31, %s32
          %s246 = smul.u32 2, %s245
          %s248 = ssub.s32 64, 64
          %249 = vsyncadd %s241, %s248
          %s250 = smul.addr %s246, 16
          %s251 = scalar_lea.hbm %s1, %s250
          %s252 = sshll.u32 %s244, 4
          %s253 = int_to_ptr.vmem [resolvable:$true] %s252
          %258 = dma.hbm_to_vmem [thread:$0]  %s251, 64, %s253, %s241, 64, 32, 2
        $region24: #{tpu_custom_call.1} parent=15 // pred_fallthru
          _
      $region16: #{tpu_custom_call.1} parent=5 // pred_fallthru
        _
      %p259 = scmp.le.s32.totalorder 1, %s24
      %p260 = scmp.lt.s32.totalorder %s24, 3
      %p261 = pnand %p259, %p260
      %p262 = pneg %p261
      // Predicated region
      $region25: #{tpu_custom_call.1} parent=5 // pred_check
        _
      $region26: #{tpu_custom_call.1} parent=5 // pred_check_branch
        %264 = sbr.rel (%p261) target = $region28
      $region27: #{tpu_custom_call.1} parent=5 // pred_region
        %s265 = ssub.s32 %s24, 1
        %s266 = sand.u32 %s51, 1
        %s267 = scalar_lea.sflag [#allocation7], %s266
        %s268 = sand.u32 %s51, 1
        %s269 = smul.addr %s268, 16
        %s270 = scalar_lea.vmem [#allocation6], %s269
        // Predicated region
        $region29: #{tpu_custom_call.1} parent=27 // pred_check
          %p271 = pneg %p64
        $region30: #{tpu_custom_call.1} parent=27 // pred_check_branch
          %273 = sbr.rel (%p271) target = $region32
        $region31: #{tpu_custom_call.1} parent=27 // pred_region
          %274 = dma.done %s267, 256
        $region32: #{tpu_custom_call.1} parent=27 // pred_fallthru
          _
        %s275 = sand.u32 %s79, 1
        %s276 = scalar_lea.sflag [#allocation10], %s275
        %s277 = sand.u32 %s79, 1
        %s278 = smul.addr %s277, 4
        %s279 = scalar_lea.vmem [#allocation9], %s278
        // Predicated region
        $region33: #{tpu_custom_call.1} parent=27 // pred_check
          %p280 = pneg %p92
        $region34: #{tpu_custom_call.1} parent=27 // pred_check_branch
          %282 = sbr.rel (%p280) target = $region36
        $region35: #{tpu_custom_call.1} parent=27 // pred_region
          %283 = dma.done %s276, 64
        $region36: #{tpu_custom_call.1} parent=27 // pred_fallthru
          _
        %s284 = sand.u32 %s51, 1
        %s285 = scalar_lea.sflag [#allocation7], %s284
        %s286 = sand.u32 %s51, 1
        %s287 = smul.addr %s286, 16
        %s288 = scalar_lea.vmem [#allocation6], %s287
        %p289 = pneg %p64
        %p290 = pneg %p61
        %s291 = sand.u32 %s79, 1
        %s292 = scalar_lea.sflag [#allocation10], %s291
        %s293 = sand.u32 %s79, 1
        %s294 = smul.addr %s293, 4
        %s295 = scalar_lea.vmem [#allocation9], %s294
        %p296 = pneg %p92
        %p297 = pneg %p89
        %p298 = pneg %p118
        %p299 = pneg %p115
        %s300 = sand.u32 %s105, 1
        %s301 = scalar_lea.sflag [#allocation8], %s300
        %s302 = sand.u32 %s105, 1
        %s303 = smul.addr %s302, 2
        %s304 = scalar_lea.vmem [#allocation11], %s303
        %p305 = pneg %p144
        %p306 = pneg %p141
        %s307 = sand.u32 %s29, 1
        %s308 = scalar_lea.sflag [#allocation13], %s307
        %s309 = sand.u32 %s131, 1
        %s310 = smul.addr %s309, 2
        %s311 = scalar_lea.vmem [#allocation12], %s310
        %p312 = pneg %p170
        %p313 = pneg %p167
        %s314 = sand.u32 %s29, 1
        %s315 = scalar_lea.sflag [#allocation13], %s314
        %s316 = sand.u32 %s157, 1
        %s317 = smul.addr %s316, 2
        %s318 = scalar_lea.vmem [#allocation14], %s317
        %p319 = pneg %p196
        %p320 = pneg %p193
        %p321 = scmp.lt.s32.totalorder %s33, 1
        %s322 = scalar_select %p321, %s33, 1
        %s323 = smul.addr %s322, 2
        %s324 = scalar_lea.vmem %s5, %s323
        %s325 = sadd.s32 %s33, %s34
        %s326 = smul.u32 2, %s325
        %s327 = sadd.s32 %s33, %s34
        %s328 = smul.u32 2, %s327
        %p329 = scmp.lt.s32.totalorder %s33, 1
        %s330 = scalar_select %p329, %s33, 1
        %s331 = smul.addr %s330, 2
        %s332 = scalar_lea.vmem %s5, %s331
        %p333 = scmp.eq.s32.totalorder %s34, 0
        // Predicated region
        $region37: #{tpu_custom_call.1} parent=27 // pred_check
          %p334 = pneg %p333
        $region38: #{tpu_custom_call.1} parent=27 // pred_check_branch
          %336 = sbr.rel (%p334) target = $region40
        $region39: #{tpu_custom_call.1} parent=27 // pred_region
          %vm337 = vcmask 25600
          %338 = vst.msk [vmem:[#allocation2] sm:$0x3] %vm337, 0.0
          %339 = vst.msk [vmem:[#allocation3] sm:$0x3] %vm337, 0.0
          %340 = vst.msk [vmem:[#allocation4] sm:$0x3] %vm337, 0.0
          %vm341 = vcmask 1024
          %342 = vst.msk [vmem:[#allocation5] sm:$0x3] %vm341, 0.0
        $region40: #{tpu_custom_call.1} parent=27 // pred_fallthru
          _
        %v343 = vld [vmem:[%s270] sm:$0xff]
        %v344 = vld [vmem:[%s270 + $0x8] sm:$0xff]
        %v345 = vld [vmem:[%s279] sm:$0x3]
        %v346 = vld [vmem:[%s279 + $0x2] sm:$0x3]
        %v349 = vcombine.high %v343, %v343
        %v350 = vcombine.high %v344, %v344
        %vm353 = vcmask 1043456
        %v354 = vsel %vm353, %v343, -inf
        %v355 = vrot.slane %v354, 4
        %v356 = vmax.f32 %v354, %v355
        %v357 = vrot.slane %v356, 2
        %v358 = vmax.f32 %v356, %v357
        %v359 = vrot.slane %v358, 1
        %v360 = vmax.f32 %v358, %v359
        %v361 = vsel %vm353, %v349, -inf
        %v362 = vrot.slane %v361, 4
        %v363 = vmax.f32 %v361, %v362
        %v364 = vrot.slane %v363, 2
        %v365 = vmax.f32 %v363, %v364
        %v366 = vrot.slane %v365, 1
        %v367 = vmax.f32 %v365, %v366
        %v368 = vsel %vm353, %v344, -inf
        %v369 = vrot.slane %v368, 4
        %v370 = vmax.f32 %v368, %v369
        %v371 = vrot.slane %v370, 2
        %v372 = vmax.f32 %v370, %v371
        %v373 = vrot.slane %v372, 1
        %v374 = vmax.f32 %v372, %v373
        %v375 = vsel %vm353, %v350, -inf
        %v376 = vrot.slane %v375, 4
        %v377 = vmax.f32 %v375, %v376
        %v378 = vrot.slane %v377, 2
        %v379 = vmax.f32 %v377, %v378
        %v380 = vrot.slane %v379, 1
        %v381 = vmax.f32 %v379, %v380
        %v386 = vcombine.low %v360, %v367
        %v387 = vcombine.low %v374, %v381
        %v390 = vsub.f32 %v343, %v386
        %v391 = vsub.f32 %v344, %v387
        %v392 = vmul.f32 %v390, 1.442695
        %v393 = vpow.pop %v392
        %v394 = vmul.f32 %v391, 1.442695
        %v395 = vpow.pop %v394
        %v398 = vcombine.high %v393, %v393
        %v399 = vcombine.high %v395, %v395
        %v402 = vsel %vm353, %v393, 0.0
        %v403 = vrot.slane %v402, 4
        %v404 = vadd.f32 %v402, %v403
        %v405 = vrot.slane %v404, 2
        %v406 = vadd.f32 %v404, %v405
        %v407 = vrot.slane %v406, 1
        %v408 = vadd.f32 %v406, %v407
        %v409 = vsel %vm353, %v398, 0.0
        %v410 = vrot.slane %v409, 4
        %v411 = vadd.f32 %v409, %v410
        %v412 = vrot.slane %v411, 2
        %v413 = vadd.f32 %v411, %v412
        %v414 = vrot.slane %v413, 1
        %v415 = vadd.f32 %v413, %v414
        %v416 = vsel %vm353, %v395, 0.0
        %v417 = vrot.slane %v416, 4
        %v418 = vadd.f32 %v416, %v417
        %v419 = vrot.slane %v418, 2
        %v420 = vadd.f32 %v418, %v419
        %v421 = vrot.slane %v420, 1
        %v422 = vadd.f32 %v420, %v421
        %v423 = vsel %vm353, %v399, 0.0
        %v424 = vrot.slane %v423, 4
        %v425 = vadd.f32 %v423, %v424
        %v426 = vrot.slane %v425, 2
        %v427 = vadd.f32 %v425, %v426
        %v428 = vrot.slane %v427, 1
        %v429 = vadd.f32 %v427, %v428
        %v430 = vrcp.pop %v408
        %v431 = vrcp.pop %v415
        %v432 = vrcp.pop %v422
        %v433 = vrcp.pop %v429
        %v438 = vcombine.low %v430, %v431
        %v439 = vcombine.low %v432, %v433
        %v442 = vmul.f32 %v393, %v438
        %v443 = vmul.f32 %v395, %v439
        %v444 = vlaneseq
        %v445 = vshrl.u32 %v444, 7
        %v446 = vlaneseq
        %v447 = vshrl.u32 %v446, 7
        %v448 = vsub.s32 0, %v447
        %v449 = vrot.slane %v345, %v448
        %v450 = vlaneseq
        %v451 = vshrl.u32 %v450, 7
        %v452 = vsub.s32 1, %v451
        %v453 = vrot.slane %v345, %v452
        %v454 = vlaneseq
        %v455 = vshrl.u32 %v454, 7
        %v456 = vsub.s32 0, %v455
        %v457 = vrot.slane %v346, %v456
        %v458 = vlaneseq
        %v459 = vshrl.u32 %v458, 7
        %v460 = vsub.s32 1, %v459
        %v461 = vrot.slane %v346, %v460
        %vm462 = vcmp.eq.s32.totalorder %v445, %v449
        %vm463 = vcmp.eq.s32.totalorder %v445, %v453
        %vm464 = vcmp.eq.s32.totalorder %v445, %v457
        %vm465 = vcmp.eq.s32.totalorder %v445, %v461
        %v466 = vsel %vm462, 1, 0
        %v467 = vsel %vm463, 1, 0
        %v468 = vsel %vm464, 1, 0
        %v469 = vsel %vm465, 1, 0
        %v470 = vcvt.s32.f32 %v466
        %v471 = vcvt.s32.f32 %v467
        %v472 = vcvt.s32.f32 %v468
        %v473 = vcvt.s32.f32 %v469
        %v474 = vld [vmem:[#allocation2] sm:$0x3]
        %v479 = vcombine.low %v470, %v471
        %v480 = vcombine.low %v472, %v473
        %v483 = vmul.f32 %v442, %v479
        %v484 = vmul.f32 %v443, %v480
        %v487 = vcombine.high %v483, %v483
        %v488 = vcombine.high %v484, %v484
        %v491 = vsel %vm353, %v483, 0.0
        %v492 = vsel %vm353, %v487, 0.0
        %v493 = vadd.f32 %v491, %v492
        %494 = vadd.xlane.f32.xlu0 %v493
        %v495 = vpop.xlane.xlu0 %494
        %v496 = vsel %vm353, %v484, 0.0
        %v497 = vsel %vm353, %v488, 0.0
        %v498 = vadd.f32 %v496, %v497
        %499 = vadd.xlane.f32.xlu0 %v498
        %v500 = vpop.xlane.xlu0 %499
        %v503 = vlaneseq
        %v504 = vand.u32 %v503, 127
        %v505 = vlaneseq
        %v506 = vshrl.u32 %v505, 7
        %v507 = vsub.s32 %v504, %v506
        %v508 = vrot.slane %v495, %v507
        %v509 = vlaneseq
        %v510 = vshrl.u32 %v509, 7
        %v511 = vsub.s32 %v504, %v510
        %v512 = vrot.slane %v500, %v511
        %vm513 = vcmask 1041409
        %v514 = vsel %vm513, %v512, %v508
        %v516 = vadd.f32 %v474, %v514
        %vm517 = vcmask 25600
        %518 = vst.msk [vmem:[#allocation2] sm:$0x3] %vm517, %v516
        %v519 = vld [vmem:[#allocation4] sm:$0x3]
        %v520 = vsel %vm353, %v470, 0.0
        %v521 = vsel %vm353, %v471, 0.0
        %v522 = vadd.f32 %v520, %v521
        %523 = vadd.xlane.f32.xlu0 %v522
        %v524 = vpop.xlane.xlu0 %523
        %v525 = vsel %vm353, %v472, 0.0
        %v526 = vsel %vm353, %v473, 0.0
        %v527 = vadd.f32 %v525, %v526
        %528 = vadd.xlane.f32.xlu0 %v527
        %v529 = vpop.xlane.xlu0 %528
        %v532 = vlaneseq
        %v533 = vshrl.u32 %v532, 7
        %v534 = vsub.s32 %v504, %v533
        %v535 = vrot.slane %v524, %v534
        %v536 = vlaneseq
        %v537 = vshrl.u32 %v536, 7
        %v538 = vsub.s32 %v504, %v537
        %v539 = vrot.slane %v529, %v538
        %v540 = vsel %vm513, %v539, %v535
        %v542 = vadd.f32 %v519, %v540
        %543 = vst.msk [vmem:[#allocation4] sm:$0x3] %vm517, %v542
        %v544 = vlog2.pop %v408
        %v545 = vmul.f32 %v544, 0.6931472
        %v546 = vlog2.pop %v415
        %v547 = vmul.f32 %v546, 0.6931472
        %v548 = vlog2.pop %v422
        %v549 = vmul.f32 %v548, 0.6931472
        %v550 = vlog2.pop %v429
        %v551 = vmul.f32 %v550, 0.6931472
        %v552 = vadd.f32 %v360, %v545
        %v553 = vadd.f32 %v367, %v547
        %v554 = vadd.f32 %v374, %v549
        %v555 = vadd.f32 %v381, %v551
        %vm556 = vcmp.ge.s32.totalorder %v345, 0
        %vm557 = vcmp.ge.s32.totalorder %v346, 0
        %v558 = vsel %vm556, 1, 0
        %v559 = vsel %vm557, 1, 0
        %v560 = vcvt.s32.f32 %v558
        %v561 = vcvt.s32.f32 %v559
        %v562 = vld [vmem:[#allocation3] sm:$0x3]
        %v565 = vlaneseq
        %v566 = vshrl.u32 %v565, 7
        %v567 = vsub.s32 0, %v566
        %v568 = vrot.slane %v560, %v567
        %v569 = vlaneseq
        %v570 = vshrl.u32 %v569, 7
        %v571 = vsub.s32 1, %v570
        %v572 = vrot.slane %v560, %v571
        %v573 = vlaneseq
        %v574 = vshrl.u32 %v573, 7
        %v575 = vsub.s32 0, %v574
        %v576 = vrot.slane %v561, %v575
        %v577 = vlaneseq
        %v578 = vshrl.u32 %v577, 7
        %v579 = vsub.s32 1, %v578
        %v580 = vrot.slane %v561, %v579
        %v581 = vcombine.low %v568, %v572
        %v582 = vcombine.low %v576, %v580
        %v585 = vmul.f32 %v442, %v581
        %v586 = vmul.f32 %v443, %v582
        %v589 = vcombine.high %v585, %v585
        %v590 = vcombine.high %v586, %v586
        %v593 = vsel %vm353, %v585, 0.0
        %v594 = vsel %vm353, %v589, 0.0
        %v595 = vadd.f32 %v593, %v594
        %596 = vadd.xlane.f32.xlu0 %v595
        %v597 = vpop.xlane.xlu0 %596
        %v598 = vsel %vm353, %v586, 0.0
        %v599 = vsel %vm353, %v590, 0.0
        %v600 = vadd.f32 %v598, %v599
        %601 = vadd.xlane.f32.xlu0 %v600
        %v602 = vpop.xlane.xlu0 %601
        %v605 = vlaneseq
        %v606 = vshrl.u32 %v605, 7
        %v607 = vsub.s32 %v504, %v606
        %v608 = vrot.slane %v597, %v607
        %v609 = vlaneseq
        %v610 = vshrl.u32 %v609, 7
        %v611 = vsub.s32 %v504, %v610
        %v612 = vrot.slane %v602, %v611
        %v613 = vsel %vm513, %v612, %v608
        %v615 = vadd.f32 %v562, %v613
        %616 = vst.msk [vmem:[#allocation3] sm:$0x3] %vm517, %v615
        %v621 = vmul.f32 %v552, %v568
        %v622 = vmul.f32 %v553, %v572
        %v623 = vmul.f32 %v554, %v576
        %v624 = vmul.f32 %v555, %v580
        %v625 = vmul.f32 %v343, %v479
        %v626 = vmul.f32 %v344, %v480
        %v629 = vcombine.high %v625, %v625
        %v630 = vcombine.high %v626, %v626
        %v633 = vsel %vm353, %v625, 0.0
        %v634 = vsel %vm353, %v629, 0.0
        %v635 = vadd.f32 %v633, %v634
        %636 = vadd.xlane.f32.xlu0 %v635
        %v637 = vpop.xlane.xlu0 %636
        %v638 = vsel %vm353, %v626, 0.0
        %v639 = vsel %vm353, %v630, 0.0
        %v640 = vadd.f32 %v638, %v639
        %641 = vadd.xlane.f32.xlu0 %v640
        %v642 = vpop.xlane.xlu0 %641
        %v645 = vlaneseq
        %v646 = vshrl.u32 %v645, 7
        %v647 = vsub.s32 %v504, %v646
        %v648 = vrot.slane %v637, %v647
        %v649 = vlaneseq
        %v650 = vshrl.u32 %v649, 7
        %v651 = vsub.s32 %v504, %v650
        %v652 = vrot.slane %v642, %v651
        %v653 = vsel %vm513, %v652, %v648
        %v655 = vsel %vm517, %v653, 0.0
        %656 = vadd.xlane.f32.xlu0 %v655
        %v657 = vpop.xlane.xlu0 %656
        %v658 = vld [vmem:[#allocation5] sm:$0x3]
        %vm659 = vcmask 1040384
        %v660 = vsel %vm659, %v621, 0.0
        %v661 = vsel %vm659, %v622, 0.0
        %v662 = vadd.f32 %v660, %v661
        %663 = vadd.xlane.f32.xlu0 %v662
        %v664 = vpop.xlane.xlu0 %663
        %v665 = vsel %vm659, %v623, 0.0
        %v666 = vsel %vm659, %v624, 0.0
        %v667 = vadd.f32 %v665, %v666
        %668 = vadd.xlane.f32.xlu0 %v667
        %v669 = vpop.xlane.xlu0 %668
        %v671 = vlaneseq
        %v672 = vshrl.u32 %v671, 7
        %v673 = vsub.s32 0, %v672
        %v674 = vrot.slane %v657, %v673
        %v675 = vlaneseq
        %v676 = vshrl.u32 %v675, 7
        %v677 = vsub.s32 1, %v676
        %v678 = vrot.slane %v657, %v677
        %v681 = vsub.f32 %v664, %v674
        %v682 = vsub.f32 %v669, %v678
        %v685 = vrot.slane %v682, 7
        %v686 = vsel %vm513, %v685, %v681
        %v688 = vadd.f32 %v658, %v686
        %vm689 = vcmask 1024
        %690 = vst.msk [vmem:[#allocation5] sm:$0x3] %vm689, %v688
        // Predicated region
        $region41: #{tpu_custom_call.1} parent=27 // pred_check
          %p691 = pneg %p333
        $region42: #{tpu_custom_call.1} parent=27 // pred_check_branch
          %693 = sbr.rel (%p691) target = $region44
        $region43: #{tpu_custom_call.1} parent=27 // pred_region
          %v694 = vld [vmem:[#allocation2] sm:$0x3]
          %695 = vst.msk [vmem:[%s304] sm:$0x3] %vm517, %v694
          %v696 = vld [vmem:[#allocation3] sm:$0x3]
          %v697 = vsub.f32 %v696, %v694
          %698 = vst.msk [vmem:[%s311] sm:$0x3] %vm517, %v697
          %v699 = vld [vmem:[#allocation4] sm:$0x3]
          %v700 = vsub.f32 %v699, %v694
          %701 = vst.msk [vmem:[%s318] sm:$0x3] %vm517, %v700
          %v702 = vld [vmem:[#allocation5] sm:$0x3]
          %703 = vst.msk [vmem:[%s332] sm:$0x3] %vm689, %v702
        $region44: #{tpu_custom_call.1} parent=27 // pred_fallthru
          _
        %s704 = sand.u32 %s105, 1
        %s705 = scalar_lea.sflag [#allocation8], %s704
        %s706 = sand.u32 %s105, 1
        %s707 = smul.addr %s706, 2
        %s708 = scalar_lea.vmem [#allocation11], %s707
        %s709 = sand.u32 %s29, 1
        %s710 = scalar_lea.sflag [#allocation13], %s709
        %s711 = sand.u32 %s131, 1
        %s712 = smul.addr %s711, 2
        %s713 = scalar_lea.vmem [#allocation12], %s712
        %s714 = sand.u32 %s29, 1
        %s715 = scalar_lea.sflag [#allocation13], %s714
        %s716 = sand.u32 %s157, 1
        %s717 = smul.addr %s716, 2
        %s718 = scalar_lea.vmem [#allocation14], %s717
        %p719 = scmp.lt.s32.totalorder %s33, 1
        %s720 = scalar_select %p719, %s33, 1
        %s721 = smul.addr %s720, 2
        %s722 = scalar_lea.vmem %s5, %s721
        // Predicated region
        $region45: #{tpu_custom_call.1} parent=27 // pred_check
          %p723 = pneg %p115
        $region46: #{tpu_custom_call.1} parent=27 // pred_check_branch
          %725 = sbr.rel (%p723) target = $region48
        $region47: #{tpu_custom_call.1} parent=27 // pred_region
          %s727 = ssub.s32 32, 32
          %728 = vsyncadd %s705, %s727
          %s729 = smul.addr %s33, 32
          %s730 = scalar_lea.hbm %s2, %s729
          %s732 = sshll.u32 %s708, 4
          %s733 = int_to_ptr.vmem [resolvable:$true] %s732
          %735 = dma.vmem_to_hbm [thread:$0]  %s733, 32, %s730, %s705
        $region48: #{tpu_custom_call.1} parent=27 // pred_fallthru
          _
        // Predicated region
        $region49: #{tpu_custom_call.1} parent=27 // pred_check
          %p736 = pneg %p141
        $region50: #{tpu_custom_call.1} parent=27 // pred_check_branch
          %738 = sbr.rel (%p736) target = $region52
        $region51: #{tpu_custom_call.1} parent=27 // pred_region
          %s740 = ssub.s32 32, 32
          %741 = vsyncadd %s710, %s740
          %s742 = smul.addr %s33, 32
          %s743 = scalar_lea.hbm %s3, %s742
          %s745 = sshll.u32 %s713, 4
          %s746 = int_to_ptr.vmem [resolvable:$true] %s745
          %748 = dma.vmem_to_hbm [thread:$0]  %s746, 32, %s743, %s710
        $region52: #{tpu_custom_call.1} parent=27 // pred_fallthru
          _
        // Predicated region
        $region53: #{tpu_custom_call.1} parent=27 // pred_check
          %p749 = pneg %p167
        $region54: #{tpu_custom_call.1} parent=27 // pred_check_branch
          %751 = sbr.rel (%p749) target = $region56
        $region55: #{tpu_custom_call.1} parent=27 // pred_region
          %s753 = ssub.s32 32, 32
          %754 = vsyncadd %s715, %s753
          %s755 = smul.addr %s33, 32
          %s756 = scalar_lea.hbm %s4, %s755
          %s758 = sshll.u32 %s718, 4
          %s759 = int_to_ptr.vmem [resolvable:$true] %s758
          %761 = dma.vmem_to_hbm [thread:$0]  %s759, 32, %s756, %s715
        $region56: #{tpu_custom_call.1} parent=27 // pred_fallthru
          _
        // Predicated region
        $region57: #{tpu_custom_call.1} parent=27 // pred_check
          %p762 = pneg %p193
        $region58: #{tpu_custom_call.1} parent=27 // pred_check_branch
          %764 = sbr.rel (%p762) target = $region60
        $region59: #{tpu_custom_call.1} parent=27 // pred_region
          _
        $region60: #{tpu_custom_call.1} parent=27 // pred_fallthru
          _
      $region28: #{tpu_custom_call.1} parent=5 // pred_fallthru
        _
      %p765 = scmp.le.s32.totalorder 2, %s24
      // Predicated region
      $region61: #{tpu_custom_call.1} parent=5 // pred_check
        %p766 = pneg %p765
      $region62: #{tpu_custom_call.1} parent=5 // pred_check_branch
        %768 = sbr.rel (%p766) target = $region64
      $region63: #{tpu_custom_call.1} parent=5 // pred_region
        %s769 = ssub.s32 %s24, 2
        // Predicated region
        $region65: #{tpu_custom_call.1} parent=63 // pred_check
          %p770 = pneg %p121
        $region66: #{tpu_custom_call.1} parent=63 // pred_check_branch
          %772 = sbr.rel (%p770) target = $region68
        $region67: #{tpu_custom_call.1} parent=63 // pred_region
          %s773 = sand.u32 %s106, 1
          %s774 = scalar_lea.sflag [#allocation8], %s773
          %s775 = sand.u32 %s106, 1
          %s776 = smul.addr %s775, 2
          %s777 = scalar_lea.vmem [#allocation11], %s776
          %778 = dma.done %s774, 32
        $region68: #{tpu_custom_call.1} parent=63 // pred_fallthru
          _
        // Predicated region
        $region69: #{tpu_custom_call.1} parent=63 // pred_check
          %p779 = pneg %p147
        $region70: #{tpu_custom_call.1} parent=63 // pred_check_branch
          %781 = sbr.rel (%p779) target = $region72
        $region71: #{tpu_custom_call.1} parent=63 // pred_region
          %s782 = sand.u32 %s30, 1
          %s783 = scalar_lea.sflag [#allocation13], %s782
          %s784 = sand.u32 %s132, 1
          %s785 = smul.addr %s784, 2
          %s786 = scalar_lea.vmem [#allocation12], %s785
          %787 = dma.done %s783, 32
        $region72: #{tpu_custom_call.1} parent=63 // pred_fallthru
          _
        // Predicated region
        $region73: #{tpu_custom_call.1} parent=63 // pred_check
          %p788 = pneg %p173
        $region74: #{tpu_custom_call.1} parent=63 // pred_check_branch
          %790 = sbr.rel (%p788) target = $region76
        $region75: #{tpu_custom_call.1} parent=63 // pred_region
          %s791 = sand.u32 %s30, 1
          %s792 = scalar_lea.sflag [#allocation13], %s791
          %s793 = sand.u32 %s158, 1
          %s794 = smul.addr %s793, 2
          %s795 = scalar_lea.vmem [#allocation14], %s794
          %796 = dma.done %s792, 32
        $region76: #{tpu_custom_call.1} parent=63 // pred_fallthru
          _
        // Predicated region
        $region77: #{tpu_custom_call.1} parent=63 // pred_check
          %p797 = pneg %p199
        $region78: #{tpu_custom_call.1} parent=63 // pred_check_branch
          %799 = sbr.rel (%p797) target = $region80
        $region79: #{tpu_custom_call.1} parent=63 // pred_region
          %p800 = scmp.lt.s32.totalorder %s35, 1
          %s801 = scalar_select %p800, %s35, 1
          %s802 = smul.addr %s801, 2
          %s803 = scalar_lea.vmem %s5, %s802
        $region80: #{tpu_custom_call.1} parent=63 // pred_fallthru
          _
      $region64: #{tpu_custom_call.1} parent=5 // pred_fallthru
        _
    $region6: #{tpu_custom_call.1} parent=1 // loop_footer
      %s28 = sadd.s32 1, %s24
    $region7: #{tpu_custom_call.1} parent=1 // loop_footer_branch
      %23 = sbr.rel target = $region3
    $region8: #{tpu_custom_call.1} parent=1 // loop_exit
      _
    %804 = vsyncpa [#allocation7], 1
    %s805 = scalar_lea.sflag [#allocation7], 1
    %806 = vsyncpa %s805, 1
    %807 = vsyncpa [#allocation10], 1
    %s808 = scalar_lea.sflag [#allocation10], 1
    %809 = vsyncpa %s808, 1
    %810 = vsyncpa [#allocation8], 1
    %s811 = scalar_lea.sflag [#allocation8], 1
    %812 = vsyncpa %s811, 1
    %813 = vsyncpa [#allocation13], 1
    %s814 = scalar_lea.sflag [#allocation13], 1
    %815 = vsyncpa %s814, 1

</llo_original>
